<compile_context>
chip_gen: v7x
topology: tpu7x:2x2x1
jax: 0.10.0
libtpu: 0.0.40
codegen_flags: <defaults>
</compile_context>

<pallas_src>
import jax
import jax.numpy as jnp
from jax.experimental import pallas as pl
from jax.experimental.pallas import tpu as pltpu


def _round_up(x, m):
    return ((x + m - 1) // m) * m


def _mlp_kernel(u_ref, m_ref, w1u_ref, w1m_ref, b1_ref, w2_ref, ss_ref, out_ref):
    # u_ref/m_ref:   (TB, F)  bf16  embedding rows for this batch tile
    # w1u_ref/w1m_ref: (F, 128) bf16  split halves of W1 (VMEM-resident)
    # b1_ref:        (1, 128) f32
    # w2_ref:        (1, 128) f32   fc weight as a row (broadcast multiply)
    # ss_ref:        (3,)     f32 SMEM -> [fc_bias, scale, shift]
    # out_ref:       (TB, 1)  f32

    # Layer 1 on the MXU (bf16 in, f32 accumulate), split-K so the concat never exists.
    h = jnp.dot(u_ref[...], w1u_ref[...], preferred_element_type=jnp.float32)
    h = h + jnp.dot(m_ref[...], w1m_ref[...], preferred_element_type=jnp.float32)
    h = jnp.maximum(h + b1_ref[...], 0.0)                    # ReLU, (TB, 128) f32

    # Layer 2 (128 -> 1): VPU multiply + lane reduce; no transpose, full f32.
    z = jnp.sum(h * w2_ref[...], axis=-1, keepdims=True)     # (TB, 1) f32
    z = z + ss_ref[0]                                        # fc bias
    out_ref[...] = jax.nn.sigmoid(z) * ss_ref[1] + ss_ref[2] # minmax affine (or identity)


def recommendation_forward(users, books, params, minmax=None, *, tb=2048):
    """Eval-mode forward pass matching RecommendationModel.forward."""
    n_factors = params["u_weight"].shape[1]
    hidden = params["w1"].shape[1]
    B = users.shape[0]

    # Batch tile: multiple of 128, clamped for tiny batches.  ~2 MB VMEM at
    # TB=2048 (inputs double-buffered + (TB,128) f32 intermediate), well within
    # the default scoped-VMEM limit on v5e/v6e/v7x.
    TB = min(tb, _round_up(max(B, 1), 128))
    B_pad = _round_up(B, TB)
    nb = B_pad // TB
    pad = B_pad - B

    users_p = jnp.pad(users, (0, pad))
    books_p = jnp.pad(books, (0, pad))

    # Embedding gather stays as XLA glue (dropout is identity in eval mode).
    # TODO(synk): fuse the gather into the kernel (scalar-prefetch users/books +
    # manual DMA gather from the HBM tables) to remove the remaining HBM round trip.
    u_emb = jnp.take(params["u_weight"], users_p, axis=0).astype(jnp.bfloat16)
    m_emb = jnp.take(params["m_weight"], books_p, axis=0).astype(jnp.bfloat16)

    # Split W1 so the concatenated feature matrix never exists.
    w1u = params["w1"][:n_factors].astype(jnp.bfloat16)        # (F, 128)
    w1m = params["w1"][n_factors:].astype(jnp.bfloat16)        # (F, 128)
    b1 = params["b1"].reshape(1, hidden).astype(jnp.float32)
    w2r = params["w2"].reshape(1, hidden).astype(jnp.float32)  # fc weight as a row
    b2 = params["b2"].reshape(1).astype(jnp.float32)

    if minmax is None:
        scale, shift = 1.0, 0.0
    else:
        min_r, max_r = minmax
        scale = float(max_r) - float(min_r) + 1.0
        shift = float(min_r) - 0.5
    ss = jnp.concatenate([b2, jnp.array([scale, shift], jnp.float32)])  # SMEM scalars

    flops = 2 * B_pad * (2 * n_factors) * hidden + 2 * B_pad * hidden
    bytes_accessed = (2 * B_pad * n_factors * 2          # u/m embeddings (bf16)
                      + 2 * n_factors * hidden * 2       # W1 halves (bf16)
                      + hidden * 4 + hidden * 4          # b1, w2
                      + B_pad * 4)                       # output column

    out = pl.pallas_call(
        _mlp_kernel,
        out_shape=jax.ShapeDtypeStruct((B_pad, 1), jnp.float32),
        grid=(nb,),
        in_specs=[
            pl.BlockSpec((TB, n_factors), lambda i: (i, 0)),          # user rows
            pl.BlockSpec((TB, n_factors), lambda i: (i, 0)),          # book rows
            pl.BlockSpec((n_factors, hidden), lambda i: (0, 0)),      # W1[:F]  (resident)
            pl.BlockSpec((n_factors, hidden), lambda i: (0, 0)),      # W1[F:]  (resident)
            pl.BlockSpec((1, hidden), lambda i: (0, 0)),              # b1      (resident)
            pl.BlockSpec((1, hidden), lambda i: (0, 0)),              # w2 row  (resident)
            pl.BlockSpec(memory_space=pltpu.MemorySpace.SMEM),        # [b2, scale, shift]
        ],
        out_specs=pl.BlockSpec((TB, 1), lambda i: (i, 0)),
        compiler_params=pltpu.CompilerParams(
            dimension_semantics=("parallel",)),
        cost_estimate=pl.CostEstimate(
            flops=flops, transcendentals=B_pad, bytes_accessed=bytes_accessed),
    )(u_emb, m_emb, w1u, w1m, b1, w2r, ss)

    return out[:B]


def _reference_forward(users, books, params, minmax=None):
    """Pure-JAX f32 reference of the PyTorch eval-mode forward (sanity check)."""
    feat = jnp.concatenate(
        [jnp.take(params["u_weight"], users, axis=0),
         jnp.take(params["m_weight"], books, axis=0)], axis=1)
    h = jnp.maximum(feat @ params["w1"] + params["b1"].reshape(1, -1), 0.0)
    out = jax.nn.sigmoid(h @ params["w2"].reshape(-1, 1) + params["b2"].reshape(1, 1))
    if minmax is not None:
        min_r, max_r = minmax
        out = out * (max_r - min_r + 1.0) + min_r - 0.5
    return out


def init_params(key, n_users, n_books, n_factors=50, hidden_out=128):
    k1, k2, k3, k4, k5, k6 = jax.random.split(key, 6)
    in_dim = n_factors * 2
    return {
        # nn.Embedding default init: N(0, 1)
        "u_weight": jax.random.normal(k1, (n_users, n_factors), jnp.float32),
        "m_weight": jax.random.normal(k2, (n_books, n_factors), jnp.float32),
        # Linear(n_factors*2, 128): stored as (in, out)
        "w1": jax.random.normal(k3, (in_dim, hidden_out), jnp.float32) * 0.05,
        "b1": jax.random.normal(k4, (1, hidden_out), jnp.float32) * 0.05,
        # Linear(128, 1)
        "w2": jax.random.normal(k5, (hidden_out, 1), jnp.float32) * 0.05,
        "b2": jax.random.normal(k6, (1, 1), jnp.float32) * 0.05,
    }


if __name__ == "__main__":
    root = jax.random.PRNGKey(0)
    kp, ku, kb = jax.random.split(root, 3)

    n_users, n_books, n_factors = 64, 96, 50
    B = 8

    params = init_params(kp, n_users, n_books, n_factors)
    users = jax.random.randint(ku, (B,), 0, n_users, dtype=jnp.int32)
    books = jax.random.randint(kb, (B,), 0, n_books, dtype=jnp.int32)

    # Run once without minmax and once with minmax=(1, 5), like the reference.
    out_plain = recommendation_forward(users, books, params, minmax=None)
    out_scaled = recommendation_forward(users, books, params, minmax=(1.0, 5.0))
    jax.block_until_ready(out_plain)
    jax.block_until_ready(out_scaled)

    assert out_plain.shape == (B, 1)
    assert out_scaled.shape == (B, 1)

    # Numerical sanity vs f32 pure-JAX reference (loose tol: bf16 MXU inputs).
    ref_plain = _reference_forward(users, books, params, minmax=None)
    ref_scaled = _reference_forward(users, books, params, minmax=(1.0, 5.0))
    assert jnp.max(jnp.abs(out_plain - ref_plain)) < 5e-2
    assert jnp.max(jnp.abs(out_scaled - ref_scaled)) < 5e-2

    print("KERNEL_OK")
</pallas_src>

<mosaic_0001>
module attributes {stable_mosaic.version = 11 : i64} {
  func.func @_mlp_kernel(%arg0: i32, %arg1: memref<128x50xbf16, #tpu.memory_space<vmem>>, %arg2: memref<128x50xbf16, #tpu.memory_space<vmem>>, %arg3: memref<50x128xbf16, #tpu.memory_space<vmem>>, %arg4: memref<50x128xbf16, #tpu.memory_space<vmem>>, %arg5: memref<1x128xf32, #tpu.memory_space<vmem>>, %arg6: memref<1x128xf32, #tpu.memory_space<vmem>>, %arg7: memref<3xf32, #tpu.memory_space<smem>>, %arg8: memref<128x1xf32, #tpu.memory_space<vmem>>) attributes {dimension_semantics = [#tpu.dimension_semantics<parallel>], iteration_bounds = array<i64: 1>, scalar_prefetch = 0 : i64, scratch_operands = 0 : i64, tpu.core_type = #tpu.core_type<tc>, window_params = [{transform_indices = @transform_0, window_bounds = array<i64: 128, 50>}, {transform_indices = @transform_1, window_bounds = array<i64: 128, 50>}, {pipeline_mode = #tpu.pipeline_mode<synchronous>, transform_indices = @transform_2, window_bounds = array<i64: 50, 128>}, {pipeline_mode = #tpu.pipeline_mode<synchronous>, transform_indices = @transform_3, window_bounds = array<i64: 50, 128>}, {pipeline_mode = #tpu.pipeline_mode<synchronous>, transform_indices = @transform_4, window_bounds = array<i64: 1, 128>}, {pipeline_mode = #tpu.pipeline_mode<synchronous>, transform_indices = @transform_5, window_bounds = array<i64: 1, 128>}, {transform_indices = @transform_6, window_bounds = array<i64: 3>}, {transform_indices = @transform_7, window_bounds = array<i64: 128, 1>}]} {
    %c0 = arith.constant 0 : index
    %c0_0 = arith.constant 0 : index
    %0 = vector.load %arg1[%c0, %c0_0] : memref<128x50xbf16, #tpu.memory_space<vmem>>, vector<128x50xbf16>
    %c0_1 = arith.constant 0 : index
    %c0_2 = arith.constant 0 : index
    %1 = vector.load %arg3[%c0_1, %c0_2] : memref<50x128xbf16, #tpu.memory_space<vmem>>, vector<50x128xbf16>
    %cst = arith.constant dense<0.000000e+00> : vector<128x128xf32>
    %2 = tpu.matmul %0, %1, %cst {dimension_numbers = #tpu.dot_dimension_numbers<[1], [0], [0], [1], [0, 0, 1, 1], [], []>} : vector<128x50xbf16>, vector<50x128xbf16>, vector<128x128xf32> -> vector<128x128xf32>
    %c0_3 = arith.constant 0 : index
    %c0_4 = arith.constant 0 : index
    %3 = vector.load %arg2[%c0_3, %c0_4] : memref<128x50xbf16, #tpu.memory_space<vmem>>, vector<128x50xbf16>
    %c0_5 = arith.constant 0 : index
    %c0_6 = arith.constant 0 : index
    %4 = vector.load %arg4[%c0_5, %c0_6] : memref<50x128xbf16, #tpu.memory_space<vmem>>, vector<50x128xbf16>
    %cst_7 = arith.constant dense<0.000000e+00> : vector<128x128xf32>
    %5 = tpu.matmul %3, %4, %cst_7 {dimension_numbers = #tpu.dot_dimension_numbers<[1], [0], [0], [1], [0, 0, 1, 1], [], []>} : vector<128x50xbf16>, vector<50x128xbf16>, vector<128x128xf32> -> vector<128x128xf32>
    %6 = arith.addf %2, %5 : vector<128x128xf32>
    %c0_8 = arith.constant 0 : index
    %c0_9 = arith.constant 0 : index
    %7 = vector.load %arg5[%c0_8, %c0_9] : memref<1x128xf32, #tpu.memory_space<vmem>>, vector<1x128xf32>
    %8 = vector.broadcast %7 : vector<1x128xf32> to vector<128x128xf32>
    %9 = arith.addf %6, %8 : vector<128x128xf32>
    %cst_10 = arith.constant 0.000000e+00 : f32
    %10 = vector.broadcast %cst_10 : f32 to vector<128x128xf32>
    %11 = arith.maximumf %9, %10 : vector<128x128xf32>
    %c0_11 = arith.constant 0 : index
    %c0_12 = arith.constant 0 : index
    %12 = vector.load %arg6[%c0_11, %c0_12] : memref<1x128xf32, #tpu.memory_space<vmem>>, vector<1x128xf32>
    %13 = vector.broadcast %12 : vector<1x128xf32> to vector<128x128xf32>
    %14 = arith.mulf %11, %13 : vector<128x128xf32>
    %cst_13 = arith.constant dense<0.000000e+00> : vector<128xf32>
    %15 = vector.multi_reduction <add>, %14, %cst_13 [1] : vector<128x128xf32> to vector<128xf32>
    %16 = vector.shape_cast %15 : vector<128xf32> to vector<128x1xf32>
    %c0_14 = arith.constant 0 : index
    %17 = memref.load %arg7[%c0_14] : memref<3xf32, #tpu.memory_space<smem>>
    %18 = vector.broadcast %17 : f32 to vector<128x1xf32>
    %19 = arith.addf %16, %18 : vector<128x1xf32>
    %20 = arith.negf %19 : vector<128x1xf32>
    %21 = math.exp %20 : vector<128x1xf32>
    %cst_15 = arith.constant 1.000000e+00 : f32
    %22 = vector.broadcast %cst_15 : f32 to vector<128x1xf32>
    %23 = arith.addf %22, %21 : vector<128x1xf32>
    %24 = arith.divf %22, %23 : vector<128x1xf32>
    %c1 = arith.constant 1 : index
    %25 = memref.load %arg7[%c1] : memref<3xf32, #tpu.memory_space<smem>>
    %26 = vector.broadcast %25 : f32 to vector<128x1xf32>
    %27 = arith.mulf %24, %26 : vector<128x1xf32>
    %c2 = arith.constant 2 : index
    %28 = memref.load %arg7[%c2] : memref<3xf32, #tpu.memory_space<smem>>
    %29 = vector.broadcast %28 : f32 to vector<128x1xf32>
    %30 = arith.addf %27, %29 : vector<128x1xf32>
    %c0_16 = arith.constant 0 : index
    %c0_17 = arith.constant 0 : index
    %31 = vector.load %arg8[%c0_16, %c0_17] : memref<128x1xf32, #tpu.memory_space<vmem>>, vector<128x1xf32>
    tpu.vector_store %arg8[%c0_16, %c0_17], %30 {strides = array<i32>} : memref<128x1xf32, #tpu.memory_space<vmem>>, vector<128x1xf32>,
    return
  }
  func.func @transform_0(%arg0: i32) -> (i32, i32) {
    %c0_i32 = arith.constant 0 : i32
    %c0_i32_0 = arith.constant 0 : i32
    return %arg0, %c0_i32 : i32, i32
  }
  func.func @transform_1(%arg0: i32) -> (i32, i32) {
    %c0_i32 = arith.constant 0 : i32
    %c0_i32_0 = arith.constant 0 : i32
    return %arg0, %c0_i32 : i32, i32
  }
  func.func @transform_2(%arg0: i32) -> (i32, i32) {
    %c0_i32 = arith.constant 0 : i32
    %c0_i32_0 = arith.constant 0 : i32
    %c0_i32_1 = arith.constant 0 : i32
    return %c0_i32, %c0_i32_0 : i32, i32
  }
  func.func @transform_3(%arg0: i32) -> (i32, i32) {
    %c0_i32 = arith.constant 0 : i32
    %c0_i32_0 = arith.constant 0 : i32
    %c0_i32_1 = arith.constant 0 : i32
    return %c0_i32, %c0_i32_0 : i32, i32
  }
  func.func @transform_4(%arg0: i32) -> (i32, i32) {
    %c0_i32 = arith.constant 0 : i32
    %c0_i32_0 = arith.constant 0 : i32
    %c0_i32_1 = arith.constant 0 : i32
    return %c0_i32, %c0_i32_0 : i32, i32
  }
  func.func @transform_5(%arg0: i32) -> (i32, i32) {
    %c0_i32 = arith.constant 0 : i32
    %c0_i32_0 = arith.constant 0 : i32
    %c0_i32_1 = arith.constant 0 : i32
    return %c0_i32, %c0_i32_0 : i32, i32
  }
  func.func @transform_6(%arg0: i32) -> i32 {
    %c0_i32 = arith.constant 0 : i32
    %c0_i32_0 = arith.constant 0 : i32
    return %c0_i32 : i32
  }
  func.func @transform_7(%arg0: i32) -> (i32, i32) {
    %c0_i32 = arith.constant 0 : i32
    %c0_i32_0 = arith.constant 0 : i32
    return %arg0, %c0_i32 : i32, i32
  }
}

</mosaic_0001>

<llo_original>
// kernel: tpu_custom_call.1
$region0: #{tpu_custom_call.1}
  #allocation0 [shape = 'u32[]', space=smem, size = 0x4, offset = 0x4, fixed_abs, tag = 'smem constant byte address 0x4 - core index']
  #allocation1 [shape = 'u32[144,128]{1,0:T(1,128)}', space=vmem, size = 0x12000, scoped, tag = 'internal scratch']
  %s0 = inlined_call_operand.vmem [shape: bf16[128,50], index: 0, kind: input, shape index: {}]
  %s1 = inlined_call_operand.vmem [shape: bf16[128,50], index: 1, kind: input, shape index: {}]
  %s2 = inlined_call_operand.vmem [shape: bf16[50,128], index: 2, kind: input, shape index: {}]
  %s3 = inlined_call_operand.vmem [shape: bf16[50,128], index: 3, kind: input, shape index: {}]
  %s4 = inlined_call_operand.vmem [shape: f32[1,128], index: 4, kind: input, shape index: {}]
  %s5 = inlined_call_operand.vmem [shape: f32[1,128], index: 5, kind: input, shape index: {}]
  %s6 = inlined_call_operand.vmem [shape: f32[3], index: 6, kind: input, shape index: {}]
  %s7 = inlined_call_operand.vmem [shape: f32[128,1], index: 7, kind: output, shape index: {}]
  %s8 = sld [smem:[#allocation0]]
  $region42: #{tpu_custom_call.1} parent=0
    _
  %s10 = ssub.s32 1, %s8
  %s11 = scalar_select 0, %s10, %s8
  $region1: #{tpu_custom_call.1} parent=0
    #allocation2 [shape = 'u8[512]{0}', space=smem, size = 0x200, scoped, tag = 'input window, operand 6, single buffered']
    #allocation3 [shape = 's32[1]{0}', space=sflag, size = 0x4, scoped, tag = 'scoped memory for tpu_custom_call.1']
    %12 = vsyncpa [#allocation3], 0
    // Predicated region
    $region2: #{tpu_custom_call.1} parent=1 // pred_check
      _
    $region3: #{tpu_custom_call.1} parent=1 // pred_check_branch
      %14 = sbr.rel (0) target = $region5
    $region4: #{tpu_custom_call.1} parent=1 // pred_region
      _
    $region5: #{tpu_custom_call.1} parent=1 // pred_fallthru
      _
    // Predicated region
    $region6: #{tpu_custom_call.1} parent=1 // pred_check
      _
    $region7: #{tpu_custom_call.1} parent=1 // pred_check_branch
      %16 = sbr.rel (0) target = $region9
    $region8: #{tpu_custom_call.1} parent=1 // pred_region
      _
    $region9: #{tpu_custom_call.1} parent=1 // pred_fallthru
      _
    // Predicated region
    $region10: #{tpu_custom_call.1} parent=1 // pred_check
      _
    $region11: #{tpu_custom_call.1} parent=1 // pred_check_branch
      %18 = sbr.rel (0) target = $region13
    $region12: #{tpu_custom_call.1} parent=1 // pred_region
      _
    $region13: #{tpu_custom_call.1} parent=1 // pred_fallthru
      _
    // Predicated region
    $region14: #{tpu_custom_call.1} parent=1 // pred_check
      _
    $region15: #{tpu_custom_call.1} parent=1 // pred_check_branch
      %20 = sbr.rel (0) target = $region17
    $region16: #{tpu_custom_call.1} parent=1 // pred_region
      _
    $region17: #{tpu_custom_call.1} parent=1 // pred_fallthru
      _
    // Predicated region
    $region18: #{tpu_custom_call.1} parent=1 // pred_check
      _
    $region19: #{tpu_custom_call.1} parent=1 // pred_check_branch
      %22 = sbr.rel (0) target = $region21
    $region20: #{tpu_custom_call.1} parent=1 // pred_region
      _
    $region21: #{tpu_custom_call.1} parent=1 // pred_fallthru
      _
    // Predicated region
    $region22: #{tpu_custom_call.1} parent=1 // pred_check
      _
    $region23: #{tpu_custom_call.1} parent=1 // pred_check_branch
      %24 = sbr.rel (0) target = $region25
    $region24: #{tpu_custom_call.1} parent=1 // pred_region
      _
    $region25: #{tpu_custom_call.1} parent=1 // pred_fallthru
      _
    // Predicated region
    $region26: #{tpu_custom_call.1} parent=1 // pred_check
      _
    $region27: #{tpu_custom_call.1} parent=1 // pred_check_branch
      %26 = sbr.rel (0) target = $region29
    $region28: #{tpu_custom_call.1} parent=1 // pred_region
      %s28 = ssub.s32 16, 16
      %29 = vsyncadd [#allocation3], %s28
      %s31 = sshll.u32 %s6, 4
      %s32 = int_to_ptr.vmem [resolvable:$true] %s31
      %34 = dma.vmem_to_smem %s32, 16, [#allocation2], [#allocation3]
    $region29: #{tpu_custom_call.1} parent=1 // pred_fallthru
      _
    // Predicated region
    $region30: #{tpu_custom_call.1} parent=1 // pred_check
      _
    $region31: #{tpu_custom_call.1} parent=1 // pred_check_branch
      %36 = sbr.rel (0) target = $region33
    $region32: #{tpu_custom_call.1} parent=1 // pred_region
      %37 = dma.done [#allocation3], 16
    $region33: #{tpu_custom_call.1} parent=1 // pred_fallthru
      _
    %38 = sfence
    %v40 = vld [vmem:[%s0] sm:$0xf]
    %v41 = vld [vmem:[%s0 + $0x4] sm:$0xf]
    %v42 = vld [vmem:[%s0 + $0x8] sm:$0xf]
    %v43 = vld [vmem:[%s0 + $0xc] sm:$0xf]
    %v44 = vld [vmem:[%s0 + $0x10] sm:$0xf]
    %v45 = vld [vmem:[%s0 + $0x14] sm:$0xf]
    %v46 = vld [vmem:[%s0 + $0x18] sm:$0xf]
    %v47 = vld [vmem:[%s0 + $0x1c] sm:$0xf]
    %v48 = vld [vmem:[%s0 + $0x20] sm:$0xf]
    %v49 = vld [vmem:[%s0 + $0x24] sm:$0xf]
    %v50 = vld [vmem:[%s0 + $0x28] sm:$0xf]
    %v51 = vld [vmem:[%s0 + $0x2c] sm:$0xf]
    %v52 = vld [vmem:[%s0 + $0x30] sm:$0xf]
    %v53 = vld [vmem:[%s0 + $0x34] sm:$0xf]
    %v54 = vld [vmem:[%s0 + $0x38] sm:$0xf]
    %v55 = vld [vmem:[%s0 + $0x3c] sm:$0xf]
    %v56 = vld [vmem:[%s2] sm:$0xf]
    %v57 = vld [vmem:[%s2 + $0x4] sm:$0xf]
    %v58 = vld [vmem:[%s2 + $0x8] sm:$0xf]
    %v59 = vld [vmem:[%s2 + $0xc] sm:$0xf]
    %v60 = vld [vmem:[%s2 + $0x10] sm:$0xf]
    %v61 = vld [vmem:[%s2 + $0x14] sm:$0xf]
    %v62 = vld [vmem:[%s2 + $0x18] sm:$0x1]
    %v63 = vld [vmem:[%s1] sm:$0xf]
    %v64 = vld [vmem:[%s1 + $0x4] sm:$0xf]
    %v65 = vld [vmem:[%s1 + $0x8] sm:$0xf]
    %v66 = vld [vmem:[%s1 + $0xc] sm:$0xf]
    %v67 = vld [vmem:[%s1 + $0x10] sm:$0xf]
    %v68 = vld [vmem:[%s1 + $0x14] sm:$0xf]
    %v69 = vld [vmem:[%s1 + $0x18] sm:$0xf]
    %v70 = vld [vmem:[%s1 + $0x1c] sm:$0xf]
    %v71 = vld [vmem:[%s1 + $0x20] sm:$0xf]
    %v72 = vld [vmem:[%s1 + $0x24] sm:$0xf]
    %v73 = vld [vmem:[%s1 + $0x28] sm:$0xf]
    %v74 = vld [vmem:[%s1 + $0x2c] sm:$0xf]
    %v75 = vld [vmem:[%s1 + $0x30] sm:$0xf]
    %v76 = vld [vmem:[%s1 + $0x34] sm:$0xf]
    %v77 = vld [vmem:[%s1 + $0x38] sm:$0xf]
    %v78 = vld [vmem:[%s1 + $0x3c] sm:$0xf]
    %v79 = vld [vmem:[%s3] sm:$0xf]
    %v80 = vld [vmem:[%s3 + $0x4] sm:$0xf]
    %v81 = vld [vmem:[%s3 + $0x8] sm:$0xf]
    %v82 = vld [vmem:[%s3 + $0xc] sm:$0xf]
    %v83 = vld [vmem:[%s3 + $0x10] sm:$0xf]
    %v84 = vld [vmem:[%s3 + $0x14] sm:$0xf]
    %v85 = vld [vmem:[%s3 + $0x18] sm:$0x1]
    %v102 = vunpack.c.l.b16 %v63
    %v103 = vunpack.c.l.b16 %v64
    %v104 = vunpack.c.l.b16 %v65
    %v105 = vunpack.c.l.b16 %v66
    %v106 = vunpack.c.l.b16 %v67
    %v107 = vunpack.c.l.b16 %v68
    %v108 = vunpack.c.l.b16 %v69
    %v109 = vunpack.c.l.b16 %v70
    %v110 = vunpack.c.l.b16 %v71
    %v111 = vunpack.c.l.b16 %v72
    %v112 = vunpack.c.l.b16 %v73
    %v113 = vunpack.c.l.b16 %v74
    %v114 = vunpack.c.l.b16 %v75
    %v115 = vunpack.c.l.b16 %v76
    %v116 = vunpack.c.l.b16 %v77
    %v117 = vunpack.c.l.b16 %v78
    %v118 = vpack.c.b16 %v103, %v102
    %v119 = vpack.c.b16 %v105, %v104
    %v120 = vpack.c.b16 %v107, %v106
    %v121 = vpack.c.b16 %v109, %v108
    %v122 = vpack.c.b16 %v111, %v110
    %v123 = vpack.c.b16 %v113, %v112
    %v124 = vpack.c.b16 %v115, %v114
    %v125 = vpack.c.b16 %v117, %v116
    %v133 = vunpack.c.l.b16 %v79
    %v134 = vunpack.c.l.b16 %v80
    %v135 = vunpack.c.l.b16 %v81
    %v136 = vunpack.c.l.b16 %v82
    %v137 = vunpack.c.l.b16 %v83
    %v138 = vunpack.c.l.b16 %v84
    %v139 = vunpack.c.l.b16 %v85
    %v140 = vpack.c.b16 %v134, %v133
    %v141 = vpack.c.b16 %v136, %v135
    %v142 = vpack.c.b16 %v138, %v137
    %v143 = vpack.c.b16 %v139, %v139
    %vm147 = vcmask 408576
    %v149 = vsel %vm147, %v118, 0
    %v152 = vsel %vm147, %v119, 0
    %v155 = vsel %vm147, %v120, 0
    %v158 = vsel %vm147, %v121, 0
    %v161 = vsel %vm147, %v122, 0
    %v164 = vsel %vm147, %v123, 0
    %v167 = vsel %vm147, %v124, 0
    %v170 = vsel %vm147, %v125, 0
    %vm172 = vcmask 1040384
    %v174 = vsel %vm172, %v143, 0
    %176 = vmatprep.subr.bf16.mxu0 0
    %177 = vmatpush1.bf16.msra.mxu0 %v140
    %178 = vmatprep.subr.bf16.mxu0 0
    %179 = vmatpush1.bf16.msra.mxu0 %v141
    %180 = vmatprep.subr.bf16.mxu0 0
    %181 = vmatpush1.bf16.msra.mxu0 %v142
    %182 = vmatprep.subr.bf16.mxu0 0
    %183 = vmatpush1.bf16.msra.mxu0 %v174
    %184 = vmatprep.subr.bf16.mxu0 0
    %185 = vmatpush1.bf16.msra.mxu0 0
    %186 = vmatprep.subr.bf16.mxu0 0
    %187 = vmatpush1.bf16.msra.mxu0 0
    %188 = vmatprep.subr.bf16.mxu0 0
    %189 = vmatpush1.bf16.msra.mxu0 0
    %190 = vmatprep.subr.bf16.mxu0 0
    %191 = vmatpush1.bf16.msra.mxu0 0
    %192 = vmatprep.subr.bf16.mxu0 0
    %193 = vmatpush1.bf16.msra.mxu0 0
    %194 = vmatprep.subr.bf16.mxu0 0
    %195 = vmatpush1.bf16.msra.mxu0 0
    %196 = vmatprep.subr.bf16.mxu0 0
    %197 = vmatpush1.bf16.msra.mxu0 0
    %198 = vmatprep.subr.bf16.mxu0 0
    %199 = vmatpush1.bf16.msra.mxu0 0
    %200 = vmatprep.subr.bf16.mxu0 0
    %201 = vmatpush1.bf16.msra.mxu0 0
    %202 = vmatprep.subr.bf16.mxu0 0
    %203 = vmatpush1.bf16.msra.mxu0 0
    %204 = vmatprep.subr.bf16.mxu0 0
    %205 = vmatpush1.bf16.msra.mxu0 0
    %206 = vmatprep.subr.bf16.mxu0 0
    %207 = vmatpush1.bf16.msra.mxu0 0
    %208 = vmatprep.mubr.bf16.mxu0 0
    %209 = vmatmul.mubr.bf16.gmra.mrb[0].mxu0 %v149
    %v210 = vpop.f32.mrb[0].mxu0
    %v211 = vadd.f32 0.0, %v210
    %v212 = vpop.f32.mrb[0].mxu0
    %v213 = vpop.f32.mrb[0].mxu0
    %v214 = vadd.f32 0.0, %v213
    %v215 = vpop.f32.mrb[0].mxu0
    %216 = vmatprep.mubr.bf16.mxu0 0
    %217 = vmatmul.mubr.bf16.gmra.mrb[0].mxu0 %v152
    %v218 = vpop.f32.mrb[0].mxu0
    %v219 = vadd.f32 0.0, %v218
    %v220 = vpop.f32.mrb[0].mxu0
    %v221 = vpop.f32.mrb[0].mxu0
    %v222 = vadd.f32 0.0, %v221
    %v223 = vpop.f32.mrb[0].mxu0
    %224 = vmatprep.mubr.bf16.mxu0 0
    %225 = vmatmul.mubr.bf16.gmra.mrb[0].mxu0 %v155
    %v226 = vpop.f32.mrb[0].mxu0
    %v227 = vadd.f32 0.0, %v226
    %v228 = vpop.f32.mrb[0].mxu0
    %v229 = vpop.f32.mrb[0].mxu0
    %v230 = vadd.f32 0.0, %v229
    %v231 = vpop.f32.mrb[0].mxu0
    %232 = vmatprep.mubr.bf16.mxu0 0
    %233 = vmatmul.mubr.bf16.gmra.mrb[0].mxu0 %v158
    %v234 = vpop.f32.mrb[0].mxu0
    %v235 = vadd.f32 0.0, %v234
    %v236 = vpop.f32.mrb[0].mxu0
    %v237 = vpop.f32.mrb[0].mxu0
    %v238 = vadd.f32 0.0, %v237
    %v239 = vpop.f32.mrb[0].mxu0
    %240 = vmatprep.mubr.bf16.mxu0 0
    %241 = vmatmul.mubr.bf16.gmra.mrb[0].mxu0 %v161
    %v242 = vpop.f32.mrb[0].mxu0
    %v243 = vadd.f32 0.0, %v242
    %v244 = vpop.f32.mrb[0].mxu0
    %v245 = vpop.f32.mrb[0].mxu0
    %v246 = vadd.f32 0.0, %v245
    %v247 = vpop.f32.mrb[0].mxu0
    %248 = vmatprep.mubr.bf16.mxu0 0
    %249 = vmatmul.mubr.bf16.gmra.mrb[0].mxu0 %v164
    %v250 = vpop.f32.mrb[0].mxu0
    %v251 = vadd.f32 0.0, %v250
    %v252 = vpop.f32.mrb[0].mxu0
    %v253 = vpop.f32.mrb[0].mxu0
    %v254 = vadd.f32 0.0, %v253
    %v255 = vpop.f32.mrb[0].mxu0
    %256 = vmatprep.mubr.bf16.mxu0 0
    %257 = vmatmul.mubr.bf16.gmra.mrb[0].mxu0 %v167
    %v258 = vpop.f32.mrb[0].mxu0
    %v259 = vadd.f32 0.0, %v258
    %v260 = vpop.f32.mrb[0].mxu0
    %v261 = vpop.f32.mrb[0].mxu0
    %v262 = vadd.f32 0.0, %v261
    %v263 = vpop.f32.mrb[0].mxu0
    %264 = vmatprep.mubr.bf16.mxu0 0
    %265 = vmatmul.mubr.bf16.gmra.mrb[0].mxu0 %v170
    %v266 = vpop.f32.mrb[0].mxu0
    %v267 = vadd.f32 0.0, %v266
    %v268 = vpop.f32.mrb[0].mxu0
    %v269 = vpop.f32.mrb[0].mxu0
    %v270 = vadd.f32 0.0, %v269
    %v271 = vpop.f32.mrb[0].mxu0
    %272 = vdwg.mxu0
    %v289 = vunpack.c.l.b16 %v40
    %v290 = vunpack.c.l.b16 %v41
    %v291 = vunpack.c.l.b16 %v42
    %v292 = vunpack.c.l.b16 %v43
    %v293 = vunpack.c.l.b16 %v44
    %v294 = vunpack.c.l.b16 %v45
    %v295 = vunpack.c.l.b16 %v46
    %v296 = vunpack.c.l.b16 %v47
    %v297 = vunpack.c.l.b16 %v48
    %v298 = vunpack.c.l.b16 %v49
    %v299 = vunpack.c.l.b16 %v50
    %v300 = vunpack.c.l.b16 %v51
    %v301 = vunpack.c.l.b16 %v52
    %v302 = vunpack.c.l.b16 %v53
    %v303 = vunpack.c.l.b16 %v54
    %v304 = vunpack.c.l.b16 %v55
    %v305 = vpack.c.b16 %v290, %v289
    %v306 = vpack.c.b16 %v292, %v291
    %v307 = vpack.c.b16 %v294, %v293
    %v308 = vpack.c.b16 %v296, %v295
    %v309 = vpack.c.b16 %v298, %v297
    %v310 = vpack.c.b16 %v300, %v299
    %v311 = vpack.c.b16 %v302, %v301
    %v312 = vpack.c.b16 %v304, %v303
    %v320 = vunpack.c.l.b16 %v56
    %v321 = vunpack.c.l.b16 %v57
    %v322 = vunpack.c.l.b16 %v58
    %v323 = vunpack.c.l.b16 %v59
    %v324 = vunpack.c.l.b16 %v60
    %v325 = vunpack.c.l.b16 %v61
    %v326 = vunpack.c.l.b16 %v62
    %v327 = vpack.c.b16 %v321, %v320
    %v328 = vpack.c.b16 %v323, %v322
    %v329 = vpack.c.b16 %v325, %v324
    %v330 = vpack.c.b16 %v326, %v326
    %v335 = vsel %vm147, %v305, 0
    %v338 = vsel %vm147, %v306, 0
    %v341 = vsel %vm147, %v307, 0
    %v344 = vsel %vm147, %v308, 0
    %v347 = vsel %vm147, %v309, 0
    %v350 = vsel %vm147, %v310, 0
    %v353 = vsel %vm147, %v311, 0
    %v356 = vsel %vm147, %v312, 0
    %v359 = vsel %vm172, %v330, 0
    %361 = vmatprep.subr.bf16.mxu0 0
    %362 = vmatpush1.bf16.msra.mxu0 %v327
    %363 = vmatprep.subr.bf16.mxu0 0
    %364 = vmatpush1.bf16.msra.mxu0 %v328
    %365 = vmatprep.subr.bf16.mxu0 0
    %366 = vmatpush1.bf16.msra.mxu0 %v329
    %367 = vmatprep.subr.bf16.mxu0 0
    %368 = vmatpush1.bf16.msra.mxu0 %v359
    %369 = vmatprep.subr.bf16.mxu0 0
    %370 = vmatpush1.bf16.msra.mxu0 0
    %371 = vmatprep.subr.bf16.mxu0 0
    %372 = vmatpush1.bf16.msra.mxu0 0
    %373 = vmatprep.subr.bf16.mxu0 0
    %374 = vmatpush1.bf16.msra.mxu0 0
    %375 = vmatprep.subr.bf16.mxu0 0
    %376 = vmatpush1.bf16.msra.mxu0 0
    %377 = vmatprep.subr.bf16.mxu0 0
    %378 = vmatpush1.bf16.msra.mxu0 0
    %379 = vmatprep.subr.bf16.mxu0 0
    %380 = vmatpush1.bf16.msra.mxu0 0
    %381 = vmatprep.subr.bf16.mxu0 0
    %382 = vmatpush1.bf16.msra.mxu0 0
    %383 = vmatprep.subr.bf16.mxu0 0
    %384 = vmatpush1.bf16.msra.mxu0 0
    %385 = vmatprep.subr.bf16.mxu0 0
    %386 = vmatpush1.bf16.msra.mxu0 0
    %387 = vmatprep.subr.bf16.mxu0 0
    %388 = vmatpush1.bf16.msra.mxu0 0
    %389 = vmatprep.subr.bf16.mxu0 0
    %390 = vmatpush1.bf16.msra.mxu0 0
    %391 = vmatprep.subr.bf16.mxu0 0
    %392 = vmatpush1.bf16.msra.mxu0 0
    %393 = vmatprep.mubr.bf16.mxu0 0
    %394 = vmatmul.mubr.bf16.gmra.mrb[0].mxu0 %v335
    %v395 = vpop.f32.mrb[0].mxu0
    %v396 = vadd.f32 %v211, %v395
    %v397 = vpop.f32.mrb[0].mxu0
    %v398 = vpop.f32.mrb[0].mxu0
    %v399 = vadd.f32 %v214, %v398
    %v400 = vpop.f32.mrb[0].mxu0
    %401 = vmatprep.mubr.bf16.mxu0 0
    %402 = vmatmul.mubr.bf16.gmra.mrb[0].mxu0 %v338
    %v403 = vpop.f32.mrb[0].mxu0
    %v404 = vadd.f32 %v219, %v403
    %v405 = vpop.f32.mrb[0].mxu0
    %v406 = vpop.f32.mrb[0].mxu0
    %v407 = vadd.f32 %v222, %v406
    %v408 = vpop.f32.mrb[0].mxu0
    %409 = vmatprep.mubr.bf16.mxu0 0
    %410 = vmatmul.mubr.bf16.gmra.mrb[0].mxu0 %v341
    %v411 = vpop.f32.mrb[0].mxu0
    %v412 = vadd.f32 %v227, %v411
    %v413 = vpop.f32.mrb[0].mxu0
    %v414 = vpop.f32.mrb[0].mxu0
    %v415 = vadd.f32 %v230, %v414
    %v416 = vpop.f32.mrb[0].mxu0
    %417 = vmatprep.mubr.bf16.mxu0 0
    %418 = vmatmul.mubr.bf16.gmra.mrb[0].mxu0 %v344
    %v419 = vpop.f32.mrb[0].mxu0
    %v420 = vadd.f32 %v235, %v419
    %v421 = vpop.f32.mrb[0].mxu0
    %v422 = vpop.f32.mrb[0].mxu0
    %v423 = vadd.f32 %v238, %v422
    %v424 = vpop.f32.mrb[0].mxu0
    %425 = vmatprep.mubr.bf16.mxu0 0
    %426 = vmatmul.mubr.bf16.gmra.mrb[0].mxu0 %v347
    %v427 = vpop.f32.mrb[0].mxu0
    %v428 = vadd.f32 %v243, %v427
    %v429 = vpop.f32.mrb[0].mxu0
    %v430 = vpop.f32.mrb[0].mxu0
    %v431 = vadd.f32 %v246, %v430
    %v432 = vpop.f32.mrb[0].mxu0
    %433 = vmatprep.mubr.bf16.mxu0 0
    %434 = vmatmul.mubr.bf16.gmra.mrb[0].mxu0 %v350
    %v435 = vpop.f32.mrb[0].mxu0
    %v436 = vadd.f32 %v251, %v435
    %v437 = vpop.f32.mrb[0].mxu0
    %v438 = vpop.f32.mrb[0].mxu0
    %v439 = vadd.f32 %v254, %v438
    %v440 = vpop.f32.mrb[0].mxu0
    %441 = vmatprep.mubr.bf16.mxu0 0
    %442 = vmatmul.mubr.bf16.gmra.mrb[0].mxu0 %v353
    %v443 = vpop.f32.mrb[0].mxu0
    %v444 = vadd.f32 %v259, %v443
    %v445 = vpop.f32.mrb[0].mxu0
    %v446 = vpop.f32.mrb[0].mxu0
    %v447 = vadd.f32 %v262, %v446
    %v448 = vpop.f32.mrb[0].mxu0
    %449 = vmatprep.mubr.bf16.mxu0 0
    %450 = vmatmul.mubr.bf16.gmra.mrb[0].mxu0 %v356
    %v451 = vpop.f32.mrb[0].mxu0
    %v452 = vadd.f32 %v267, %v451
    %v453 = vpop.f32.mrb[0].mxu0
    %v454 = vpop.f32.mrb[0].mxu0
    %v455 = vadd.f32 %v270, %v454
    %v456 = vpop.f32.mrb[0].mxu0
    %457 = vdwg.mxu0
    %v458 = vld [vmem:[%s4] sm:$0x1]
    %v460 = vlaneseq
    %v461 = vshrl.u32 %v460, 7
    %v462 = vsub.s32 0, %v461
    %v463 = vrot.slane %v458, %v462
    %v465 = vadd.f32 %v396, %v463
    %v466 = vadd.f32 %v399, %v463
    %v467 = vadd.f32 %v404, %v463
    %v468 = vadd.f32 %v407, %v463
    %v469 = vadd.f32 %v412, %v463
    %v470 = vadd.f32 %v415, %v463
    %v471 = vadd.f32 %v420, %v463
    %v472 = vadd.f32 %v423, %v463
    %v473 = vadd.f32 %v428, %v463
    %v474 = vadd.f32 %v431, %v463
    %v475 = vadd.f32 %v436, %v463
    %v476 = vadd.f32 %v439, %v463
    %v477 = vadd.f32 %v444, %v463
    %v478 = vadd.f32 %v447, %v463
    %v479 = vadd.f32 %v452, %v463
    %v480 = vadd.f32 %v455, %v463
    %v481 = vmax.f32 %v465, 0.0
    %v482 = vmax.f32 %v466, 0.0
    %v483 = vmax.f32 %v467, 0.0
    %v484 = vmax.f32 %v468, 0.0
    %v485 = vmax.f32 %v469, 0.0
    %v486 = vmax.f32 %v470, 0.0
    %v487 = vmax.f32 %v471, 0.0
    %v488 = vmax.f32 %v472, 0.0
    %v489 = vmax.f32 %v473, 0.0
    %v490 = vmax.f32 %v474, 0.0
    %v491 = vmax.f32 %v475, 0.0
    %v492 = vmax.f32 %v476, 0.0
    %v493 = vmax.f32 %v477, 0.0
    %v494 = vmax.f32 %v478, 0.0
    %v495 = vmax.f32 %v479, 0.0
    %v496 = vmax.f32 %v480, 0.0
    %v497 = vld [vmem:[%s5] sm:$0x1]
    %v499 = vlaneseq
    %v500 = vshrl.u32 %v499, 7
    %v501 = vsub.s32 0, %v500
    %v502 = vrot.slane %v497, %v501
    %v504 = vmul.f32 %v481, %v502
    %v505 = vmul.f32 %v482, %v502
    %v506 = vmul.f32 %v483, %v502
    %v507 = vmul.f32 %v484, %v502
    %v508 = vmul.f32 %v485, %v502
    %v509 = vmul.f32 %v486, %v502
    %v510 = vmul.f32 %v487, %v502
    %v511 = vmul.f32 %v488, %v502
    %v512 = vmul.f32 %v489, %v502
    %v513 = vmul.f32 %v490, %v502
    %v514 = vmul.f32 %v491, %v502
    %v515 = vmul.f32 %v492, %v502
    %v516 = vmul.f32 %v493, %v502
    %v517 = vmul.f32 %v494, %v502
    %v518 = vmul.f32 %v495, %v502
    %v519 = vmul.f32 %v496, %v502
    %520 = vadd.xlane.f32.xlu0 %v504
    %v521 = vpop.xlane.xlu0 %520
    %522 = vadd.xlane.f32.xlu0 %v505
    %v523 = vpop.xlane.xlu0 %522
    %524 = vadd.xlane.f32.xlu0 %v506
    %v525 = vpop.xlane.xlu0 %524
    %526 = vadd.xlane.f32.xlu0 %v507
    %v527 = vpop.xlane.xlu0 %526
    %528 = vadd.xlane.f32.xlu0 %v508
    %v529 = vpop.xlane.xlu0 %528
    %530 = vadd.xlane.f32.xlu0 %v509
    %v531 = vpop.xlane.xlu0 %530
    %532 = vadd.xlane.f32.xlu0 %v510
    %v533 = vpop.xlane.xlu0 %532
    %534 = vadd.xlane.f32.xlu0 %v511
    %v535 = vpop.xlane.xlu0 %534
    %536 = vadd.xlane.f32.xlu0 %v512
    %v537 = vpop.xlane.xlu0 %536
    %538 = vadd.xlane.f32.xlu0 %v513
    %v539 = vpop.xlane.xlu0 %538
    %540 = vadd.xlane.f32.xlu0 %v514
    %v541 = vpop.xlane.xlu0 %540
    %542 = vadd.xlane.f32.xlu0 %v515
    %v543 = vpop.xlane.xlu0 %542
    %544 = vadd.xlane.f32.xlu0 %v516
    %v545 = vpop.xlane.xlu0 %544
    %546 = vadd.xlane.f32.xlu0 %v517
    %v547 = vpop.xlane.xlu0 %546
    %548 = vadd.xlane.f32.xlu0 %v518
    %v549 = vpop.xlane.xlu0 %548
    %550 = vadd.xlane.f32.xlu0 %v519
    %v551 = vpop.xlane.xlu0 %550
    %s552 = sld [smem:[#allocation2]]
    %v553 = vstv %s552
    %v554 = vadd.f32 %v521, %v553
    %v555 = vadd.f32 %v523, %v553
    %v556 = vadd.f32 %v525, %v553
    %v557 = vadd.f32 %v527, %v553
    %v558 = vadd.f32 %v529, %v553
    %v559 = vadd.f32 %v531, %v553
    %v560 = vadd.f32 %v533, %v553
    %v561 = vadd.f32 %v535, %v553
    %v562 = vadd.f32 %v537, %v553
    %v563 = vadd.f32 %v539, %v553
    %v564 = vadd.f32 %v541, %v553
    %v565 = vadd.f32 %v543, %v553
    %v566 = vadd.f32 %v545, %v553
    %v567 = vadd.f32 %v547, %v553
    %v568 = vadd.f32 %v549, %v553
    %v569 = vadd.f32 %v551, %v553
    %v570 = vxor.u32 %v554, 2147483648
    %v571 = vxor.u32 %v555, 2147483648
    %v572 = vxor.u32 %v556, 2147483648
    %v573 = vxor.u32 %v557, 2147483648
    %v574 = vxor.u32 %v558, 2147483648
    %v575 = vxor.u32 %v559, 2147483648
    %v576 = vxor.u32 %v560, 2147483648
    %v577 = vxor.u32 %v561, 2147483648
    %v578 = vxor.u32 %v562, 2147483648
    %v579 = vxor.u32 %v563, 2147483648
    %v580 = vxor.u32 %v564, 2147483648
    %v581 = vxor.u32 %v565, 2147483648
    %v582 = vxor.u32 %v566, 2147483648
    %v583 = vxor.u32 %v567, 2147483648
    %v584 = vxor.u32 %v568, 2147483648
    %v585 = vxor.u32 %v569, 2147483648
    %v586 = vmul.f32 %v570, 1.442695
    %v587 = vpow.pop %v586
    %v588 = vmul.f32 %v571, 1.442695
    %v589 = vpow.pop %v588
    %v590 = vmul.f32 %v572, 1.442695
    %v591 = vpow.pop %v590
    %v592 = vmul.f32 %v573, 1.442695
    %v593 = vpow.pop %v592
    %v594 = vmul.f32 %v574, 1.442695
    %v595 = vpow.pop %v594
    %v596 = vmul.f32 %v575, 1.442695
    %v597 = vpow.pop %v596
    %v598 = vmul.f32 %v576, 1.442695
    %v599 = vpow.pop %v598
    %v600 = vmul.f32 %v577, 1.442695
    %v601 = vpow.pop %v600
    %v602 = vmul.f32 %v578, 1.442695
    %v603 = vpow.pop %v602
    %v604 = vmul.f32 %v579, 1.442695
    %v605 = vpow.pop %v604
    %v606 = vmul.f32 %v580, 1.442695
    %v607 = vpow.pop %v606
    %v608 = vmul.f32 %v581, 1.442695
    %v609 = vpow.pop %v608
    %v610 = vmul.f32 %v582, 1.442695
    %v611 = vpow.pop %v610
    %v612 = vmul.f32 %v583, 1.442695
    %v613 = vpow.pop %v612
    %v614 = vmul.f32 %v584, 1.442695
    %v615 = vpow.pop %v614
    %v616 = vmul.f32 %v585, 1.442695
    %v617 = vpow.pop %v616
    %v618 = vadd.f32 %v587, 1.0
    %v619 = vadd.f32 %v589, 1.0
    %v620 = vadd.f32 %v591, 1.0
    %v621 = vadd.f32 %v593, 1.0
    %v622 = vadd.f32 %v595, 1.0
    %v623 = vadd.f32 %v597, 1.0
    %v624 = vadd.f32 %v599, 1.0
    %v625 = vadd.f32 %v601, 1.0
    %v626 = vadd.f32 %v603, 1.0
    %v627 = vadd.f32 %v605, 1.0
    %v628 = vadd.f32 %v607, 1.0
    %v629 = vadd.f32 %v609, 1.0
    %v630 = vadd.f32 %v611, 1.0
    %v631 = vadd.f32 %v613, 1.0
    %v632 = vadd.f32 %v615, 1.0
    %v633 = vadd.f32 %v617, 1.0
    %v634 = vrcp.pop %v618
    %v635 = vmul.f32 1.0, %v634
    %v636 = vrcp.pop %v619
    %v637 = vmul.f32 1.0, %v636
    %v638 = vrcp.pop %v620
    %v639 = vmul.f32 1.0, %v638
    %v640 = vrcp.pop %v621
    %v641 = vmul.f32 1.0, %v640
    %v642 = vrcp.pop %v622
    %v643 = vmul.f32 1.0, %v642
    %v644 = vrcp.pop %v623
    %v645 = vmul.f32 1.0, %v644
    %v646 = vrcp.pop %v624
    %v647 = vmul.f32 1.0, %v646
    %v648 = vrcp.pop %v625
    %v649 = vmul.f32 1.0, %v648
    %v650 = vrcp.pop %v626
    %v651 = vmul.f32 1.0, %v650
    %v652 = vrcp.pop %v627
    %v653 = vmul.f32 1.0, %v652
    %v654 = vrcp.pop %v628
    %v655 = vmul.f32 1.0, %v654
    %v656 = vrcp.pop %v629
    %v657 = vmul.f32 1.0, %v656
    %v658 = vrcp.pop %v630
    %v659 = vmul.f32 1.0, %v658
    %v660 = vrcp.pop %v631
    %v661 = vmul.f32 1.0, %v660
    %v662 = vrcp.pop %v632
    %v663 = vmul.f32 1.0, %v662
    %v664 = vrcp.pop %v633
    %v665 = vmul.f32 1.0, %v664
    %s666 = sld [smem:[#allocation2 + $0x1]]
    %v667 = vstv %s666
    %v668 = vmul.f32 %v635, %v667
    %v669 = vmul.f32 %v637, %v667
    %v670 = vmul.f32 %v639, %v667
    %v671 = vmul.f32 %v641, %v667
    %v672 = vmul.f32 %v643, %v667
    %v673 = vmul.f32 %v645, %v667
    %v674 = vmul.f32 %v647, %v667
    %v675 = vmul.f32 %v649, %v667
    %v676 = vmul.f32 %v651, %v667
    %v677 = vmul.f32 %v653, %v667
    %v678 = vmul.f32 %v655, %v667
    %v679 = vmul.f32 %v657, %v667
    %v680 = vmul.f32 %v659, %v667
    %v681 = vmul.f32 %v661, %v667
    %v682 = vmul.f32 %v663, %v667
    %v683 = vmul.f32 %v665, %v667
    %s684 = sld [smem:[#allocation2 + $0x2]]
    %v685 = vstv %s684
    %v686 = vadd.f32 %v668, %v685
    %v687 = vadd.f32 %v669, %v685
    %v688 = vadd.f32 %v670, %v685
    %v689 = vadd.f32 %v671, %v685
    %v690 = vadd.f32 %v672, %v685
    %v691 = vadd.f32 %v673, %v685
    %v692 = vadd.f32 %v674, %v685
    %v693 = vadd.f32 %v675, %v685
    %v694 = vadd.f32 %v676, %v685
    %v695 = vadd.f32 %v677, %v685
    %v696 = vadd.f32 %v678, %v685
    %v697 = vadd.f32 %v679, %v685
    %v698 = vadd.f32 %v680, %v685
    %v699 = vadd.f32 %v681, %v685
    %v700 = vadd.f32 %v682, %v685
    %v701 = vadd.f32 %v683, %v685
    %vm702 = vcmask 7168
    %703 = vst.msk [vmem:[%s7] sm:$0xff] %vm702, %v686
    %704 = vst.msk [vmem:[%s7 + $0x8] sm:$0xff] %vm702, %v687
    %705 = vst.msk [vmem:[%s7 + $0x10] sm:$0xff] %vm702, %v688
    %706 = vst.msk [vmem:[%s7 + $0x18] sm:$0xff] %vm702, %v689
    %707 = vst.msk [vmem:[%s7 + $0x20] sm:$0xff] %vm702, %v690
    %708 = vst.msk [vmem:[%s7 + $0x28] sm:$0xff] %vm702, %v691
    %709 = vst.msk [vmem:[%s7 + $0x30] sm:$0xff] %vm702, %v692
    %710 = vst.msk [vmem:[%s7 + $0x38] sm:$0xff] %vm702, %v693
    %711 = vst.msk [vmem:[%s7 + $0x40] sm:$0xff] %vm702, %v694
    %712 = vst.msk [vmem:[%s7 + $0x48] sm:$0xff] %vm702, %v695
    %713 = vst.msk [vmem:[%s7 + $0x50] sm:$0xff] %vm702, %v696
    %714 = vst.msk [vmem:[%s7 + $0x58] sm:$0xff] %vm702, %v697
    %715 = vst.msk [vmem:[%s7 + $0x60] sm:$0xff] %vm702, %v698
    %716 = vst.msk [vmem:[%s7 + $0x68] sm:$0xff] %vm702, %v699
    %717 = vst.msk [vmem:[%s7 + $0x70] sm:$0xff] %vm702, %v700
    %718 = vst.msk [vmem:[%s7 + $0x78] sm:$0xff] %vm702, %v701
    // Predicated region
    $region34: #{tpu_custom_call.1} parent=1 // pred_check
      _
    $region35: #{tpu_custom_call.1} parent=1 // pred_check_branch
      %720 = sbr.rel (0) target = $region37
    $region36: #{tpu_custom_call.1} parent=1 // pred_region
      _
    $region37: #{tpu_custom_call.1} parent=1 // pred_fallthru
      _
    // Predicated region
    $region38: #{tpu_custom_call.1} parent=1 // pred_check
      _
    $region39: #{tpu_custom_call.1} parent=1 // pred_check_branch
      %722 = sbr.rel (0) target = $region41
    $region40: #{tpu_custom_call.1} parent=1 // pred_region
      _
    $region41: #{tpu_custom_call.1} parent=1 // pred_fallthru
      _
    %723 = vsyncpa [#allocation3], 1

</llo_original>
